<compile_context>
chip_gen: v7x
topology: tpu7x:2x2x1
jax: 0.10.0
libtpu: 0.0.40
codegen_flags: <defaults>
</compile_context>

<pallas_src>
import jax
import jax.numpy as jnp
from jax.experimental import pallas as pl
from jax.experimental.pallas import tpu as pltpu

NEG_SLOPE = 0.01  # torch.nn.LeakyReLU default
LANE = 128


def _leaky_relu(x):
    return jnp.where(x >= 0, x, NEG_SLOPE * x)


def _round_up(n, m):
    return ((n + m - 1) // m) * m


def mlp_kernel(x_ref,
               w1_ref, b1_ref,
               w2_ref, b2_ref,
               w3_ref, b3_ref,
               w4_ref, b4_ref,
               o_ref):
    # x arrives f32 at natural width D; cast to bf16 in-kernel (cheap VPU work,
    # hidden under the input DMA). MXU accumulates in f32; bias + LeakyReLU in f32.
    x = x_ref[...].astype(jnp.bfloat16)

    h = jnp.dot(x, w1_ref[...], preferred_element_type=jnp.float32) + b1_ref[...]
    h = _leaky_relu(h).astype(jnp.bfloat16)

    h = jnp.dot(h, w2_ref[...], preferred_element_type=jnp.float32) + b2_ref[...]
    h = _leaky_relu(h).astype(jnp.bfloat16)

    h = jnp.dot(h, w3_ref[...], preferred_element_type=jnp.float32) + b3_ref[...]
    h = _leaky_relu(h)  # keep f32; padded columns are exactly 0

    # Final Linear(10 -> 1): VPU broadcast-multiply + XLU lane reduction.
    # Only the real scalar per row is written -> 4 B/row HBM writeback.
    out = jnp.sum(h * w4_ref[...], axis=-1, keepdims=True) + b4_ref[...]
    o_ref[...] = out.astype(o_ref.dtype)


def prepare_params(params):
    """Pad feature dims to the 128-lane width and cast MXU weights to bf16.
    Call once, outside the forward hot path (review: hoist per-call pad/cast)."""
    (w1, b1), (w2, b2), (w3, b3), (w4, b4) = params
    D = w1.shape[0]
    H1p = _round_up(w1.shape[1], LANE)   # 100 -> 128
    H2p = _round_up(w2.shape[1], LANE)   # 100 -> 128
    H3p = _round_up(w3.shape[1], LANE)   # 10  -> 128

    def pad_w_bf16(w, rows, cols):
        w = jnp.asarray(w, jnp.float32)
        return jnp.pad(w, ((0, rows - w.shape[0]),
                           (0, cols - w.shape[1]))).astype(jnp.bfloat16)

    def pad_row_f32(v, cols):
        v = jnp.asarray(v, jnp.float32).reshape(1, -1)
        return jnp.pad(v, ((0, 0), (0, cols - v.shape[1])))

    w1p = pad_w_bf16(w1, D, H1p)      # rows stay = D: x is fed unpadded
    w2p = pad_w_bf16(w2, H1p, H2p)
    w3p = pad_w_bf16(w3, H2p, H3p)
    b1p = pad_row_f32(b1, H1p)
    b2p = pad_row_f32(b2, H2p)
    b3p = pad_row_f32(b3, H3p)
    # Last layer is evaluated on the VPU in f32: (1, H3p) row vector + scalar bias.
    w4row = pad_row_f32(jnp.asarray(w4, jnp.float32).reshape(-1), H3p)
    b4s = jnp.asarray(b4, jnp.float32).reshape(1, 1)
    return (w1p, b1p, w2p, b2p, w3p, b3p, w4row, b4s)


def simple_model_forward(x, prepared, *, batch_tile=2048):
    """Fused 4-layer MLP forward.

    x:        (B, D) float32
    prepared: output of prepare_params(params)
    Returns (B, 1) float32, matching the PyTorch module's output.
    """
    w1p, b1p, w2p, b2p, w3p, b3p, w4row, b4s = prepared
    B, D = x.shape
    assert w1p.shape[0] == D, "input feature dim mismatch"

    # Batch tiling: pad batch only to a multiple of 8; large tiles (default 2048
    # rows) amortize per-grid-step overhead; keep >=2 grid steps when the batch is
    # big enough so the parallel axis can shard across both v7x TensorCores.
    Bp8 = _round_up(B, 8)
    n_steps = pl.cdiv(Bp8, batch_tile)
    if Bp8 >= 256:
        n_steps = max(n_steps, 2)
    TB = _round_up(pl.cdiv(Bp8, n_steps), 8)
    Bp = n_steps * TB

    xp = x if Bp == B else jnp.pad(x, ((0, Bp - B), (0, 0)))

    # Weights/biases: full-array blocks with a constant block index -> DMA'd once
    # and VMEM-resident across every batch tile.
    def resident(a):
        return pl.BlockSpec(a.shape, lambda i: (0, 0))

    out = pl.pallas_call(
        mlp_kernel,
        out_shape=jax.ShapeDtypeStruct((Bp, 1), jnp.float32),
        grid=(n_steps,),
        in_specs=[pl.BlockSpec((TB, D), lambda i: (i, 0)),   # x: natural width D
                  resident(w1p), resident(b1p),
                  resident(w2p), resident(b2p),
                  resident(w3p), resident(b3p),
                  resident(w4row), resident(b4s)],
        out_specs=pl.BlockSpec((TB, 1), lambda i: (i, 0)),
        compiler_params=pltpu.CompilerParams(
            dimension_semantics=("parallel",)),
    )(xp, w1p, b1p, w2p, b2p, w3p, b3p, w4row, b4s)

    return out[:B]


def init_params(key, n_dims_input):
    """Deterministic init mimicking torch.nn.Linear (uniform(-1/sqrt(fan_in), +)).
    Weights kept as (in, out) — the transpose of PyTorch's (out, in)."""
    dims = [(n_dims_input, 100), (100, 100), (100, 10), (10, 1)]
    params = []
    for (fan_in, fan_out) in dims:
        key, kw, kb = jax.random.split(key, 3)
        bound = 1.0 / jnp.sqrt(fan_in)
        w = jax.random.uniform(kw, (fan_in, fan_out), jnp.float32, -bound, bound)
        b = jax.random.uniform(kb, (1, fan_out), jnp.float32, -bound, bound)
        params.append((w, b))
    return params


def reference_forward(x, params):
    """Pure-f32 JAX reference (matches the PyTorch module semantics; Dropout p=0
    is the identity)."""
    h = x
    for i, (w, b) in enumerate(params):
        h = h @ w + b
        if i < len(params) - 1:
            h = _leaky_relu(h)
    return h


if __name__ == "__main__":
    key = jax.random.PRNGKey(0)
    kx, kp, kx2 = jax.random.split(key, 3)

    # Small shapes consistent with the toy module.
    B, D = 8, 32
    x = jax.random.normal(kx, (B, D), jnp.float32)
    params = init_params(kp, D)
    prepared = prepare_params(params)   # pad/cast once, outside the hot path

    fwd = jax.jit(simple_model_forward, static_argnames=("batch_tile",))

    out = jax.block_until_ready(fwd(x, prepared))
    ref = reference_forward(x, params)
    assert out.shape == (B, 1)
    # bf16 matmul operands (f32 accumulation) -> relaxed tolerance vs f32 reference.
    assert jnp.allclose(out, ref, atol=1e-2, rtol=1e-2), "mismatch vs reference (small batch)"

    # Exercise the multi-step grid + batch padding path (B not a multiple of 8).
    B2 = 300
    x2 = jax.random.normal(kx2, (B2, D), jnp.float32)
    out2 = jax.block_until_ready(fwd(x2, prepared))
    ref2 = reference_forward(x2, params)
    assert out2.shape == (B2, 1)
    assert jnp.allclose(out2, ref2, atol=1e-2, rtol=1e-2), "mismatch vs reference (tiled batch)"

    print("KERNEL_OK")
</pallas_src>

<mosaic_0001>
module attributes {stable_mosaic.version = 11 : i64} {
  func.func @mlp_kernel(%arg0: i32, %arg1: memref<8x32xf32, #tpu.memory_space<vmem>>, %arg2: memref<32x128xbf16, #tpu.memory_space<vmem>>, %arg3: memref<1x128xf32, #tpu.memory_space<vmem>>, %arg4: memref<128x128xbf16, #tpu.memory_space<vmem>>, %arg5: memref<1x128xf32, #tpu.memory_space<vmem>>, %arg6: memref<128x128xbf16, #tpu.memory_space<vmem>>, %arg7: memref<1x128xf32, #tpu.memory_space<vmem>>, %arg8: memref<1x128xf32, #tpu.memory_space<vmem>>, %arg9: memref<1x1xf32, #tpu.memory_space<vmem>>, %arg10: memref<8x1xf32, #tpu.memory_space<vmem>>) attributes {dimension_semantics = [#tpu.dimension_semantics<parallel>], iteration_bounds = array<i64: 1>, scalar_prefetch = 0 : i64, scratch_operands = 0 : i64, tpu.core_type = #tpu.core_type<tc>, window_params = [{transform_indices = @transform_0, window_bounds = array<i64: 8, 32>}, {pipeline_mode = #tpu.pipeline_mode<synchronous>, transform_indices = @transform_1, window_bounds = array<i64: 32, 128>}, {pipeline_mode = #tpu.pipeline_mode<synchronous>, transform_indices = @transform_2, window_bounds = array<i64: 1, 128>}, {pipeline_mode = #tpu.pipeline_mode<synchronous>, transform_indices = @transform_3, window_bounds = array<i64: 128, 128>}, {pipeline_mode = #tpu.pipeline_mode<synchronous>, transform_indices = @transform_4, window_bounds = array<i64: 1, 128>}, {pipeline_mode = #tpu.pipeline_mode<synchronous>, transform_indices = @transform_5, window_bounds = array<i64: 128, 128>}, {pipeline_mode = #tpu.pipeline_mode<synchronous>, transform_indices = @transform_6, window_bounds = array<i64: 1, 128>}, {pipeline_mode = #tpu.pipeline_mode<synchronous>, transform_indices = @transform_7, window_bounds = array<i64: 1, 128>}, {pipeline_mode = #tpu.pipeline_mode<synchronous>, transform_indices = @transform_8, window_bounds = array<i64: 1, 1>}, {transform_indices = @transform_9, window_bounds = array<i64: 8, 1>}]} {
    %c0 = arith.constant 0 : index
    %c0_0 = arith.constant 0 : index
    %0 = vector.load %arg1[%c0, %c0_0] : memref<8x32xf32, #tpu.memory_space<vmem>>, vector<8x32xf32>
    %1 = arith.truncf %0 : vector<8x32xf32> to vector<8x32xbf16>
    %c0_1 = arith.constant 0 : index
    %c0_2 = arith.constant 0 : index
    %2 = vector.load %arg2[%c0_1, %c0_2] : memref<32x128xbf16, #tpu.memory_space<vmem>>, vector<32x128xbf16>
    %cst = arith.constant dense<0.000000e+00> : vector<8x128xf32>
    %3 = tpu.matmul %1, %2, %cst {dimension_numbers = #tpu.dot_dimension_numbers<[1], [0], [0], [1], [0, 0, 1, 1], [], []>} : vector<8x32xbf16>, vector<32x128xbf16>, vector<8x128xf32> -> vector<8x128xf32>
    %c0_3 = arith.constant 0 : index
    %c0_4 = arith.constant 0 : index
    %4 = vector.load %arg3[%c0_3, %c0_4] : memref<1x128xf32, #tpu.memory_space<vmem>>, vector<1x128xf32>
    %5 = vector.broadcast %4 : vector<1x128xf32> to vector<8x128xf32>
    %6 = arith.addf %3, %5 : vector<8x128xf32>
    %cst_5 = arith.constant 0.000000e+00 : f32
    %7 = vector.broadcast %cst_5 : f32 to vector<8x128xf32>
    %8 = arith.cmpf oge, %6, %7 : vector<8x128xf32>
    %cst_6 = arith.constant 0.00999999977 : f32
    %9 = vector.broadcast %cst_6 : f32 to vector<8x128xf32>
    %10 = arith.mulf %9, %6 : vector<8x128xf32>
    %11 = arith.select %8, %6, %10 : vector<8x128xi1>, vector<8x128xf32>
    %12 = arith.truncf %11 : vector<8x128xf32> to vector<8x128xbf16>
    %c0_7 = arith.constant 0 : index
    %c0_8 = arith.constant 0 : index
    %13 = vector.load %arg4[%c0_7, %c0_8] : memref<128x128xbf16, #tpu.memory_space<vmem>>, vector<128x128xbf16>
    %cst_9 = arith.constant dense<0.000000e+00> : vector<8x128xf32>
    %14 = tpu.matmul %12, %13, %cst_9 {dimension_numbers = #tpu.dot_dimension_numbers<[1], [0], [0], [1], [0, 0, 1, 1], [], []>} : vector<8x128xbf16>, vector<128x128xbf16>, vector<8x128xf32> -> vector<8x128xf32>
    %c0_10 = arith.constant 0 : index
    %c0_11 = arith.constant 0 : index
    %15 = vector.load %arg5[%c0_10, %c0_11] : memref<1x128xf32, #tpu.memory_space<vmem>>, vector<1x128xf32>
    %16 = vector.broadcast %15 : vector<1x128xf32> to vector<8x128xf32>
    %17 = arith.addf %14, %16 : vector<8x128xf32>
    %cst_12 = arith.constant 0.000000e+00 : f32
    %18 = vector.broadcast %cst_12 : f32 to vector<8x128xf32>
    %19 = arith.cmpf oge, %17, %18 : vector<8x128xf32>
    %cst_13 = arith.constant 0.00999999977 : f32
    %20 = vector.broadcast %cst_13 : f32 to vector<8x128xf32>
    %21 = arith.mulf %20, %17 : vector<8x128xf32>
    %22 = arith.select %19, %17, %21 : vector<8x128xi1>, vector<8x128xf32>
    %23 = arith.truncf %22 : vector<8x128xf32> to vector<8x128xbf16>
    %c0_14 = arith.constant 0 : index
    %c0_15 = arith.constant 0 : index
    %24 = vector.load %arg6[%c0_14, %c0_15] : memref<128x128xbf16, #tpu.memory_space<vmem>>, vector<128x128xbf16>
    %cst_16 = arith.constant dense<0.000000e+00> : vector<8x128xf32>
    %25 = tpu.matmul %23, %24, %cst_16 {dimension_numbers = #tpu.dot_dimension_numbers<[1], [0], [0], [1], [0, 0, 1, 1], [], []>} : vector<8x128xbf16>, vector<128x128xbf16>, vector<8x128xf32> -> vector<8x128xf32>
    %c0_17 = arith.constant 0 : index
    %c0_18 = arith.constant 0 : index
    %26 = vector.load %arg7[%c0_17, %c0_18] : memref<1x128xf32, #tpu.memory_space<vmem>>, vector<1x128xf32>
    %27 = vector.broadcast %26 : vector<1x128xf32> to vector<8x128xf32>
    %28 = arith.addf %25, %27 : vector<8x128xf32>
    %cst_19 = arith.constant 0.000000e+00 : f32
    %29 = vector.broadcast %cst_19 : f32 to vector<8x128xf32>
    %30 = arith.cmpf oge, %28, %29 : vector<8x128xf32>
    %cst_20 = arith.constant 0.00999999977 : f32
    %31 = vector.broadcast %cst_20 : f32 to vector<8x128xf32>
    %32 = arith.mulf %31, %28 : vector<8x128xf32>
    %33 = arith.select %30, %28, %32 : vector<8x128xi1>, vector<8x128xf32>
    %c0_21 = arith.constant 0 : index
    %c0_22 = arith.constant 0 : index
    %34 = vector.load %arg8[%c0_21, %c0_22] : memref<1x128xf32, #tpu.memory_space<vmem>>, vector<1x128xf32>
    %35 = vector.broadcast %34 : vector<1x128xf32> to vector<8x128xf32>
    %36 = arith.mulf %33, %35 : vector<8x128xf32>
    %cst_23 = arith.constant dense<0.000000e+00> : vector<8xf32>
    %37 = vector.multi_reduction <add>, %36, %cst_23 [1] : vector<8x128xf32> to vector<8xf32>
    %38 = vector.shape_cast %37 : vector<8xf32> to vector<8x1xf32>
    %c0_24 = arith.constant 0 : index
    %c0_25 = arith.constant 0 : index
    %39 = vector.load %arg9[%c0_24, %c0_25] : memref<1x1xf32, #tpu.memory_space<vmem>>, vector<1x1xf32>
    %40 = vector.broadcast %39 : vector<1x1xf32> to vector<8x1xf32>
    %41 = arith.addf %38, %40 : vector<8x1xf32>
    %c0_26 = arith.constant 0 : index
    %c0_27 = arith.constant 0 : index
    %42 = vector.load %arg10[%c0_26, %c0_27] : memref<8x1xf32, #tpu.memory_space<vmem>>, vector<8x1xf32>
    tpu.vector_store %arg10[%c0_26, %c0_27], %41 {strides = array<i32>} : memref<8x1xf32, #tpu.memory_space<vmem>>, vector<8x1xf32>,
    return
  }
  func.func @transform_0(%arg0: i32) -> (i32, i32) {
    %c0_i32 = arith.constant 0 : i32
    %c0_i32_0 = arith.constant 0 : i32
    return %arg0, %c0_i32 : i32, i32
  }
  func.func @transform_1(%arg0: i32) -> (i32, i32) {
    %c0_i32 = arith.constant 0 : i32
    %c0_i32_0 = arith.constant 0 : i32
    %c0_i32_1 = arith.constant 0 : i32
    return %c0_i32, %c0_i32_0 : i32, i32
  }
  func.func @transform_2(%arg0: i32) -> (i32, i32) {
    %c0_i32 = arith.constant 0 : i32
    %c0_i32_0 = arith.constant 0 : i32
    %c0_i32_1 = arith.constant 0 : i32
    return %c0_i32, %c0_i32_0 : i32, i32
  }
  func.func @transform_3(%arg0: i32) -> (i32, i32) {
    %c0_i32 = arith.constant 0 : i32
    %c0_i32_0 = arith.constant 0 : i32
    %c0_i32_1 = arith.constant 0 : i32
    return %c0_i32, %c0_i32_0 : i32, i32
  }
  func.func @transform_4(%arg0: i32) -> (i32, i32) {
    %c0_i32 = arith.constant 0 : i32
    %c0_i32_0 = arith.constant 0 : i32
    %c0_i32_1 = arith.constant 0 : i32
    return %c0_i32, %c0_i32_0 : i32, i32
  }
  func.func @transform_5(%arg0: i32) -> (i32, i32) {
    %c0_i32 = arith.constant 0 : i32
    %c0_i32_0 = arith.constant 0 : i32
    %c0_i32_1 = arith.constant 0 : i32
    return %c0_i32, %c0_i32_0 : i32, i32
  }
  func.func @transform_6(%arg0: i32) -> (i32, i32) {
    %c0_i32 = arith.constant 0 : i32
    %c0_i32_0 = arith.constant 0 : i32
    %c0_i32_1 = arith.constant 0 : i32
    return %c0_i32, %c0_i32_0 : i32, i32
  }
  func.func @transform_7(%arg0: i32) -> (i32, i32) {
    %c0_i32 = arith.constant 0 : i32
    %c0_i32_0 = arith.constant 0 : i32
    %c0_i32_1 = arith.constant 0 : i32
    return %c0_i32, %c0_i32_0 : i32, i32
  }
  func.func @transform_8(%arg0: i32) -> (i32, i32) {
    %c0_i32 = arith.constant 0 : i32
    %c0_i32_0 = arith.constant 0 : i32
    %c0_i32_1 = arith.constant 0 : i32
    return %c0_i32, %c0_i32_0 : i32, i32
  }
  func.func @transform_9(%arg0: i32) -> (i32, i32) {
    %c0_i32 = arith.constant 0 : i32
    %c0_i32_0 = arith.constant 0 : i32
    return %arg0, %c0_i32 : i32, i32
  }
}

</mosaic_0001>

<llo_original>
// kernel: simple_model_forward.1
$region0: #{simple_model_forward.1}
  #allocation0 [shape = 'u32[]', space=smem, size = 0x4, offset = 0x4, fixed_abs, tag = 'smem constant byte address 0x4 - core index']
  #allocation1 [shape = 'u32[144,128]{1,0:T(1,128)}', space=vmem, size = 0x12000, scoped, tag = 'internal scratch']
  #allocation2 [shape = 'f32[1,1]{1,0:T(1,128)S(1)}', space=vmem, size = 0x200, scoped, tag = 'scoped memory for simple_model_forward.1']
  %s0 = inlined_call_operand.hbm [shape: f32[8,32], index: 0, kind: input, shape index: {}]
  %s1 = inlined_call_operand.hbm [shape: bf16[32,128], index: 1, kind: input, shape index: {}]
  %s2 = inlined_call_operand.vmem [shape: f32[1,128], index: 2, kind: input, shape index: {}]
  %s3 = inlined_call_operand.hbm [shape: bf16[128,128], index: 3, kind: input, shape index: {}]
  %s4 = inlined_call_operand.vmem [shape: f32[1,128], index: 4, kind: input, shape index: {}]
  %s5 = inlined_call_operand.hbm [shape: bf16[128,128], index: 5, kind: input, shape index: {}]
  %s6 = inlined_call_operand.vmem [shape: f32[1,128], index: 6, kind: input, shape index: {}]
  %s7 = inlined_call_operand.vmem [shape: f32[1,128], index: 7, kind: input, shape index: {}]
  %s8 = inlined_call_operand.<no memory space> [shape: f32[1,1], index: 8, kind: input, shape index: {}]
  %s9 = inlined_call_operand.vmem [shape: f32[8,1], index: 9, kind: output, shape index: {}]
  %s10 = sld [smem:[#allocation0]]
  $region62: #{simple_model_forward.1} parent=0
    _
  %s12 = ssub.s32 1, %s10
  %s13 = scalar_select 0, %s12, %s10
  %v14 = vstv %s8
  %15 = vst [vmem:[#allocation2] sm:$0x1] %v14
  $region1: #{simple_model_forward.1} parent=0
    #allocation3 [shape = 'u8[4096]{0}', space=vmem, size = 0x1000, scoped, tag = 'input window, operand 0, single buffered']
    #allocation4 [shape = 's32[1]{0}', space=sflag, size = 0x4, scoped, tag = 'scoped memory for simple_model_forward.1']
    #allocation5 [shape = 'u8[8192]{0}', space=vmem, size = 0x2000, scoped, tag = 'input window, operand 1, single buffered']
    #allocation6 [shape = 's32[1]{0}', space=sflag, size = 0x4, scoped, tag = 'scoped memory for simple_model_forward.1']
    #allocation7 [shape = 'u8[32768]{0}', space=vmem, size = 0x8000, scoped, tag = 'input window, operand 3, single buffered']
    #allocation8 [shape = 'u8[32768]{0}', space=vmem, size = 0x8000, scoped, tag = 'input window, operand 5, single buffered']
    #allocation9 [shape = 's32[1]{0}', space=sflag, size = 0x4, scoped, tag = 'scoped memory for simple_model_forward.1']
    %16 = vsyncpa [#allocation4], 0
    %17 = vsyncpa [#allocation6], 0
    %18 = vsyncpa [#allocation9], 0
    // Predicated region
    $region2: #{simple_model_forward.1} parent=1 // pred_check
      _
    $region3: #{simple_model_forward.1} parent=1 // pred_check_branch
      %20 = sbr.rel (0) target = $region5
    $region4: #{simple_model_forward.1} parent=1 // pred_region
      %s22 = ssub.s32 128, 128
      %23 = vsyncadd [#allocation4], %s22
      %s25 = sshll.u32 [#allocation3], 4
      %s26 = int_to_ptr.vmem [resolvable:$true] %s25
      %28 = dma.hbm_to_vmem [thread:$0]  %s0, 128, %s26, [#allocation4]
    $region5: #{simple_model_forward.1} parent=1 // pred_fallthru
      _
    // Predicated region
    $region6: #{simple_model_forward.1} parent=1 // pred_check
      _
    $region7: #{simple_model_forward.1} parent=1 // pred_check_branch
      %30 = sbr.rel (0) target = $region9
    $region8: #{simple_model_forward.1} parent=1 // pred_region
      %s32 = ssub.s32 256, 256
      %33 = vsyncadd [#allocation6], %s32
      %s34 = sshll.u32 [#allocation5], 4
      %s35 = int_to_ptr.vmem [resolvable:$true] %s34
      %40 = dma.hbm_to_vmem [thread:$0]  %s1, 256, %s35, [#allocation6], 64, 64, 4
    $region9: #{simple_model_forward.1} parent=1 // pred_fallthru
      _
    // Predicated region
    $region10: #{simple_model_forward.1} parent=1 // pred_check
      _
    $region11: #{simple_model_forward.1} parent=1 // pred_check_branch
      %42 = sbr.rel (0) target = $region13
    $region12: #{simple_model_forward.1} parent=1 // pred_region
      _
    $region13: #{simple_model_forward.1} parent=1 // pred_fallthru
      _
    // Predicated region
    $region14: #{simple_model_forward.1} parent=1 // pred_check
      _
    $region15: #{simple_model_forward.1} parent=1 // pred_check_branch
      %44 = sbr.rel (0) target = $region17
    $region16: #{simple_model_forward.1} parent=1 // pred_region
      %s46 = ssub.s32 1024, 1024
      %47 = vsyncadd [#allocation6], %s46
      %s48 = sshll.u32 [#allocation7], 4
      %s49 = int_to_ptr.vmem [resolvable:$true] %s48
      %54 = dma.hbm_to_vmem [thread:$0]  %s3, 1024, %s49, [#allocation6], 64, 64, 4
    $region17: #{simple_model_forward.1} parent=1 // pred_fallthru
      _
    // Predicated region
    $region18: #{simple_model_forward.1} parent=1 // pred_check
      _
    $region19: #{simple_model_forward.1} parent=1 // pred_check_branch
      %56 = sbr.rel (0) target = $region21
    $region20: #{simple_model_forward.1} parent=1 // pred_region
      _
    $region21: #{simple_model_forward.1} parent=1 // pred_fallthru
      _
    // Predicated region
    $region22: #{simple_model_forward.1} parent=1 // pred_check
      _
    $region23: #{simple_model_forward.1} parent=1 // pred_check_branch
      %58 = sbr.rel (0) target = $region25
    $region24: #{simple_model_forward.1} parent=1 // pred_region
      %s60 = ssub.s32 1024, 1024
      %61 = vsyncadd [#allocation9], %s60
      %s62 = sshll.u32 [#allocation8], 4
      %s63 = int_to_ptr.vmem [resolvable:$true] %s62
      %68 = dma.hbm_to_vmem [thread:$0]  %s5, 1024, %s63, [#allocation9], 64, 64, 4
    $region25: #{simple_model_forward.1} parent=1 // pred_fallthru
      _
    // Predicated region
    $region26: #{simple_model_forward.1} parent=1 // pred_check
      _
    $region27: #{simple_model_forward.1} parent=1 // pred_check_branch
      %70 = sbr.rel (0) target = $region29
    $region28: #{simple_model_forward.1} parent=1 // pred_region
      _
    $region29: #{simple_model_forward.1} parent=1 // pred_fallthru
      _
    // Predicated region
    $region30: #{simple_model_forward.1} parent=1 // pred_check
      _
    $region31: #{simple_model_forward.1} parent=1 // pred_check_branch
      %72 = sbr.rel (0) target = $region33
    $region32: #{simple_model_forward.1} parent=1 // pred_region
      _
    $region33: #{simple_model_forward.1} parent=1 // pred_fallthru
      _
    // Predicated region
    $region34: #{simple_model_forward.1} parent=1 // pred_check
      _
    $region35: #{simple_model_forward.1} parent=1 // pred_check_branch
      %74 = sbr.rel (0) target = $region37
    $region36: #{simple_model_forward.1} parent=1 // pred_region
      _
    $region37: #{simple_model_forward.1} parent=1 // pred_fallthru
      _
    // Predicated region
    $region38: #{simple_model_forward.1} parent=1 // pred_check
      _
    $region39: #{simple_model_forward.1} parent=1 // pred_check_branch
      %76 = sbr.rel (0) target = $region41
    $region40: #{simple_model_forward.1} parent=1 // pred_region
      %77 = dma.done [#allocation4], 128
    $region41: #{simple_model_forward.1} parent=1 // pred_fallthru
      _
    // Predicated region
    $region42: #{simple_model_forward.1} parent=1 // pred_check
      _
    $region43: #{simple_model_forward.1} parent=1 // pred_check_branch
      %79 = sbr.rel (0) target = $region45
    $region44: #{simple_model_forward.1} parent=1 // pred_region
      %80 = dma.done [#allocation6], 256
    $region45: #{simple_model_forward.1} parent=1 // pred_fallthru
      _
    // Predicated region
    $region46: #{simple_model_forward.1} parent=1 // pred_check
      _
    $region47: #{simple_model_forward.1} parent=1 // pred_check_branch
      %82 = sbr.rel (0) target = $region49
    $region48: #{simple_model_forward.1} parent=1 // pred_region
      %83 = dma.done [#allocation6], 1024
    $region49: #{simple_model_forward.1} parent=1 // pred_fallthru
      _
    // Predicated region
    $region50: #{simple_model_forward.1} parent=1 // pred_check
      _
    $region51: #{simple_model_forward.1} parent=1 // pred_check_branch
      %85 = sbr.rel (0) target = $region53
    $region52: #{simple_model_forward.1} parent=1 // pred_region
      %86 = dma.done [#allocation9], 1024
    $region53: #{simple_model_forward.1} parent=1 // pred_fallthru
      _
    %v88 = vld [vmem:[#allocation3] sm:$0xff]
    %v89 = vpack.c.bf16 %v88, %v88
    %v90 = vld [vmem:[#allocation5] sm:$0xf]
    %v91 = vld [vmem:[#allocation5 + $0x4] sm:$0xf]
    %v92 = vld [vmem:[#allocation5 + $0x8] sm:$0xf]
    %v93 = vld [vmem:[#allocation5 + $0xc] sm:$0xf]
    %v94 = vld [vmem:[%s2] sm:$0x1]
    %v96 = vlaneseq
    %v97 = vshrl.u32 %v96, 7
    %v98 = vsub.s32 0, %v97
    %v99 = vrot.slane %v94, %v98
    %v105 = vunpack.c.l.b16 %v90
    %v106 = vunpack.c.l.b16 %v91
    %v107 = vunpack.c.l.b16 %v92
    %v108 = vunpack.c.l.b16 %v93
    %v109 = vpack.c.b16 %v106, %v105
    %v110 = vpack.c.b16 %v108, %v107
    %vm113 = vcmask 261120
    %v115 = vsel %vm113, %v89, 0
    %117 = vmatprep.subr.bf16.mxu0 0
    %118 = vmatpush1.bf16.msra.mxu0 %v109
    %119 = vmatprep.subr.bf16.mxu0 0
    %120 = vmatpush1.bf16.msra.mxu0 %v110
    %121 = vmatprep.subr.bf16.mxu0 0
    %122 = vmatpush1.bf16.msra.mxu0 0
    %123 = vmatprep.subr.bf16.mxu0 0
    %124 = vmatpush1.bf16.msra.mxu0 0
    %125 = vmatprep.subr.bf16.mxu0 0
    %126 = vmatpush1.bf16.msra.mxu0 0
    %127 = vmatprep.subr.bf16.mxu0 0
    %128 = vmatpush1.bf16.msra.mxu0 0
    %129 = vmatprep.subr.bf16.mxu0 0
    %130 = vmatpush1.bf16.msra.mxu0 0
    %131 = vmatprep.subr.bf16.mxu0 0
    %132 = vmatpush1.bf16.msra.mxu0 0
    %133 = vmatprep.subr.bf16.mxu0 0
    %134 = vmatpush1.bf16.msra.mxu0 0
    %135 = vmatprep.subr.bf16.mxu0 0
    %136 = vmatpush1.bf16.msra.mxu0 0
    %137 = vmatprep.subr.bf16.mxu0 0
    %138 = vmatpush1.bf16.msra.mxu0 0
    %139 = vmatprep.subr.bf16.mxu0 0
    %140 = vmatpush1.bf16.msra.mxu0 0
    %141 = vmatprep.subr.bf16.mxu0 0
    %142 = vmatpush1.bf16.msra.mxu0 0
    %143 = vmatprep.subr.bf16.mxu0 0
    %144 = vmatpush1.bf16.msra.mxu0 0
    %145 = vmatprep.subr.bf16.mxu0 0
    %146 = vmatpush1.bf16.msra.mxu0 0
    %147 = vmatprep.subr.bf16.mxu0 0
    %148 = vmatpush1.bf16.msra.mxu0 0
    %149 = vmatprep.mubr.bf16.mxu0 0
    %150 = vmatmul.mubr.bf16.gmra.mrb[0].mxu0 %v115
    %v151 = vpop.f32.mrb[0].mxu0
    %v152 = vadd.f32 %v99, %v151
    %v153 = vpop.f32.mrb[0].mxu0
    %v154 = vpop.f32.mrb[0].mxu0
    %v155 = vpop.f32.mrb[0].mxu0
    %156 = vdwg.mxu0
    %vm157 = vcmp.ge.f32.partialorder %v152, 0.0
    %v158 = vmul.f32 %v152, 0.01
    %v159 = vsel %vm157, %v152, %v158
    %v160 = vpack.c.bf16 %v159, %v159
    %v161 = vld [vmem:[#allocation7] sm:$0xf]
    %v162 = vld [vmem:[#allocation7 + $0x4] sm:$0xf]
    %v163 = vld [vmem:[#allocation7 + $0x8] sm:$0xf]
    %v164 = vld [vmem:[#allocation7 + $0xc] sm:$0xf]
    %v165 = vld [vmem:[#allocation7 + $0x10] sm:$0xf]
    %v166 = vld [vmem:[#allocation7 + $0x14] sm:$0xf]
    %v167 = vld [vmem:[#allocation7 + $0x18] sm:$0xf]
    %v168 = vld [vmem:[#allocation7 + $0x1c] sm:$0xf]
    %v169 = vld [vmem:[#allocation7 + $0x20] sm:$0xf]
    %v170 = vld [vmem:[#allocation7 + $0x24] sm:$0xf]
    %v171 = vld [vmem:[#allocation7 + $0x28] sm:$0xf]
    %v172 = vld [vmem:[#allocation7 + $0x2c] sm:$0xf]
    %v173 = vld [vmem:[#allocation7 + $0x30] sm:$0xf]
    %v174 = vld [vmem:[#allocation7 + $0x34] sm:$0xf]
    %v175 = vld [vmem:[#allocation7 + $0x38] sm:$0xf]
    %v176 = vld [vmem:[#allocation7 + $0x3c] sm:$0xf]
    %v177 = vld [vmem:[%s4] sm:$0x1]
    %v179 = vlaneseq
    %v180 = vshrl.u32 %v179, 7
    %v181 = vsub.s32 0, %v180
    %v182 = vrot.slane %v177, %v181
    %v200 = vunpack.c.l.b16 %v161
    %v201 = vunpack.c.l.b16 %v162
    %v202 = vunpack.c.l.b16 %v163
    %v203 = vunpack.c.l.b16 %v164
    %v204 = vunpack.c.l.b16 %v165
    %v205 = vunpack.c.l.b16 %v166
    %v206 = vunpack.c.l.b16 %v167
    %v207 = vunpack.c.l.b16 %v168
    %v208 = vunpack.c.l.b16 %v169
    %v209 = vunpack.c.l.b16 %v170
    %v210 = vunpack.c.l.b16 %v171
    %v211 = vunpack.c.l.b16 %v172
    %v212 = vunpack.c.l.b16 %v173
    %v213 = vunpack.c.l.b16 %v174
    %v214 = vunpack.c.l.b16 %v175
    %v215 = vunpack.c.l.b16 %v176
    %v216 = vpack.c.b16 %v201, %v200
    %v217 = vpack.c.b16 %v203, %v202
    %v218 = vpack.c.b16 %v205, %v204
    %v219 = vpack.c.b16 %v207, %v206
    %v220 = vpack.c.b16 %v209, %v208
    %v221 = vpack.c.b16 %v211, %v210
    %v222 = vpack.c.b16 %v213, %v212
    %v223 = vpack.c.b16 %v215, %v214
    %232 = vmatprep.subr.bf16.mxu0 0
    %233 = vmatpush1.bf16.msra.mxu0 %v216
    %234 = vmatprep.subr.bf16.mxu0 0
    %235 = vmatpush1.bf16.msra.mxu0 %v217
    %236 = vmatprep.subr.bf16.mxu0 0
    %237 = vmatpush1.bf16.msra.mxu0 %v218
    %238 = vmatprep.subr.bf16.mxu0 0
    %239 = vmatpush1.bf16.msra.mxu0 %v219
    %240 = vmatprep.subr.bf16.mxu0 0
    %241 = vmatpush1.bf16.msra.mxu0 %v220
    %242 = vmatprep.subr.bf16.mxu0 0
    %243 = vmatpush1.bf16.msra.mxu0 %v221
    %244 = vmatprep.subr.bf16.mxu0 0
    %245 = vmatpush1.bf16.msra.mxu0 %v222
    %246 = vmatprep.subr.bf16.mxu0 0
    %247 = vmatpush1.bf16.msra.mxu0 %v223
    %248 = vmatprep.subr.bf16.mxu0 0
    %249 = vmatpush1.bf16.msra.mxu0 0
    %250 = vmatprep.subr.bf16.mxu0 0
    %251 = vmatpush1.bf16.msra.mxu0 0
    %252 = vmatprep.subr.bf16.mxu0 0
    %253 = vmatpush1.bf16.msra.mxu0 0
    %254 = vmatprep.subr.bf16.mxu0 0
    %255 = vmatpush1.bf16.msra.mxu0 0
    %256 = vmatprep.subr.bf16.mxu0 0
    %257 = vmatpush1.bf16.msra.mxu0 0
    %258 = vmatprep.subr.bf16.mxu0 0
    %259 = vmatpush1.bf16.msra.mxu0 0
    %260 = vmatprep.subr.bf16.mxu0 0
    %261 = vmatpush1.bf16.msra.mxu0 0
    %262 = vmatprep.subr.bf16.mxu0 0
    %263 = vmatpush1.bf16.msra.mxu0 0
    %264 = vmatprep.mubr.bf16.mxu0 0
    %265 = vmatmul.mubr.bf16.gmra.mrb[0].mxu0 %v160
    %v266 = vpop.f32.mrb[0].mxu0
    %v267 = vadd.f32 %v182, %v266
    %v268 = vpop.f32.mrb[0].mxu0
    %v269 = vpop.f32.mrb[0].mxu0
    %v270 = vpop.f32.mrb[0].mxu0
    %271 = vdwg.mxu0
    %vm272 = vcmp.ge.f32.partialorder %v267, 0.0
    %v273 = vmul.f32 %v267, 0.01
    %v274 = vsel %vm272, %v267, %v273
    %v275 = vpack.c.bf16 %v274, %v274
    %v276 = vld [vmem:[#allocation8] sm:$0xf]
    %v277 = vld [vmem:[#allocation8 + $0x4] sm:$0xf]
    %v278 = vld [vmem:[#allocation8 + $0x8] sm:$0xf]
    %v279 = vld [vmem:[#allocation8 + $0xc] sm:$0xf]
    %v280 = vld [vmem:[#allocation8 + $0x10] sm:$0xf]
    %v281 = vld [vmem:[#allocation8 + $0x14] sm:$0xf]
    %v282 = vld [vmem:[#allocation8 + $0x18] sm:$0xf]
    %v283 = vld [vmem:[#allocation8 + $0x1c] sm:$0xf]
    %v284 = vld [vmem:[#allocation8 + $0x20] sm:$0xf]
    %v285 = vld [vmem:[#allocation8 + $0x24] sm:$0xf]
    %v286 = vld [vmem:[#allocation8 + $0x28] sm:$0xf]
    %v287 = vld [vmem:[#allocation8 + $0x2c] sm:$0xf]
    %v288 = vld [vmem:[#allocation8 + $0x30] sm:$0xf]
    %v289 = vld [vmem:[#allocation8 + $0x34] sm:$0xf]
    %v290 = vld [vmem:[#allocation8 + $0x38] sm:$0xf]
    %v291 = vld [vmem:[#allocation8 + $0x3c] sm:$0xf]
    %v292 = vld [vmem:[%s6] sm:$0x1]
    %v294 = vlaneseq
    %v295 = vshrl.u32 %v294, 7
    %v296 = vsub.s32 0, %v295
    %v297 = vrot.slane %v292, %v296
    %v315 = vunpack.c.l.b16 %v276
    %v316 = vunpack.c.l.b16 %v277
    %v317 = vunpack.c.l.b16 %v278
    %v318 = vunpack.c.l.b16 %v279
    %v319 = vunpack.c.l.b16 %v280
    %v320 = vunpack.c.l.b16 %v281
    %v321 = vunpack.c.l.b16 %v282
    %v322 = vunpack.c.l.b16 %v283
    %v323 = vunpack.c.l.b16 %v284
    %v324 = vunpack.c.l.b16 %v285
    %v325 = vunpack.c.l.b16 %v286
    %v326 = vunpack.c.l.b16 %v287
    %v327 = vunpack.c.l.b16 %v288
    %v328 = vunpack.c.l.b16 %v289
    %v329 = vunpack.c.l.b16 %v290
    %v330 = vunpack.c.l.b16 %v291
    %v331 = vpack.c.b16 %v316, %v315
    %v332 = vpack.c.b16 %v318, %v317
    %v333 = vpack.c.b16 %v320, %v319
    %v334 = vpack.c.b16 %v322, %v321
    %v335 = vpack.c.b16 %v324, %v323
    %v336 = vpack.c.b16 %v326, %v325
    %v337 = vpack.c.b16 %v328, %v327
    %v338 = vpack.c.b16 %v330, %v329
    %347 = vmatprep.subr.bf16.mxu0 0
    %348 = vmatpush1.bf16.msra.mxu0 %v331
    %349 = vmatprep.subr.bf16.mxu0 0
    %350 = vmatpush1.bf16.msra.mxu0 %v332
    %351 = vmatprep.subr.bf16.mxu0 0
    %352 = vmatpush1.bf16.msra.mxu0 %v333
    %353 = vmatprep.subr.bf16.mxu0 0
    %354 = vmatpush1.bf16.msra.mxu0 %v334
    %355 = vmatprep.subr.bf16.mxu0 0
    %356 = vmatpush1.bf16.msra.mxu0 %v335
    %357 = vmatprep.subr.bf16.mxu0 0
    %358 = vmatpush1.bf16.msra.mxu0 %v336
    %359 = vmatprep.subr.bf16.mxu0 0
    %360 = vmatpush1.bf16.msra.mxu0 %v337
    %361 = vmatprep.subr.bf16.mxu0 0
    %362 = vmatpush1.bf16.msra.mxu0 %v338
    %363 = vmatprep.subr.bf16.mxu0 0
    %364 = vmatpush1.bf16.msra.mxu0 0
    %365 = vmatprep.subr.bf16.mxu0 0
    %366 = vmatpush1.bf16.msra.mxu0 0
    %367 = vmatprep.subr.bf16.mxu0 0
    %368 = vmatpush1.bf16.msra.mxu0 0
    %369 = vmatprep.subr.bf16.mxu0 0
    %370 = vmatpush1.bf16.msra.mxu0 0
    %371 = vmatprep.subr.bf16.mxu0 0
    %372 = vmatpush1.bf16.msra.mxu0 0
    %373 = vmatprep.subr.bf16.mxu0 0
    %374 = vmatpush1.bf16.msra.mxu0 0
    %375 = vmatprep.subr.bf16.mxu0 0
    %376 = vmatpush1.bf16.msra.mxu0 0
    %377 = vmatprep.subr.bf16.mxu0 0
    %378 = vmatpush1.bf16.msra.mxu0 0
    %379 = vmatprep.mubr.bf16.mxu0 0
    %380 = vmatmul.mubr.bf16.gmra.mrb[0].mxu0 %v275
    %v381 = vpop.f32.mrb[0].mxu0
    %v382 = vadd.f32 %v297, %v381
    %v383 = vpop.f32.mrb[0].mxu0
    %v384 = vpop.f32.mrb[0].mxu0
    %v385 = vpop.f32.mrb[0].mxu0
    %386 = vdwg.mxu0
    %vm387 = vcmp.ge.f32.partialorder %v382, 0.0
    %v388 = vmul.f32 %v382, 0.01
    %v389 = vsel %vm387, %v382, %v388
    %v390 = vld [vmem:[%s7] sm:$0x1]
    %v392 = vlaneseq
    %v393 = vshrl.u32 %v392, 7
    %v394 = vsub.s32 0, %v393
    %v395 = vrot.slane %v390, %v394
    %v397 = vmul.f32 %v389, %v395
    %398 = vadd.xlane.f32.xlu0 %v397
    %v399 = vpop.xlane.xlu0 %398
    %v400 = vld [vmem:[#allocation2] sm:$0x1]
    %v402 = vlaneseq
    %v403 = vshrl.u32 %v402, 7
    %v404 = vsub.s32 0, %v403
    %v405 = vrot.slane %v400, %v404
    %v407 = vadd.f32 %v399, %v405
    %vm408 = vcmask 7168
    %409 = vst.msk [vmem:[%s9] sm:$0xff] %vm408, %v407
    // Predicated region
    $region54: #{simple_model_forward.1} parent=1 // pred_check
      _
    $region55: #{simple_model_forward.1} parent=1 // pred_check_branch
      %411 = sbr.rel (0) target = $region57
    $region56: #{simple_model_forward.1} parent=1 // pred_region
      _
    $region57: #{simple_model_forward.1} parent=1 // pred_fallthru
      _
    // Predicated region
    $region58: #{simple_model_forward.1} parent=1 // pred_check
      _
    $region59: #{simple_model_forward.1} parent=1 // pred_check_branch
      %413 = sbr.rel (0) target = $region61
    $region60: #{simple_model_forward.1} parent=1 // pred_region
      _
    $region61: #{simple_model_forward.1} parent=1 // pred_fallthru
      _
    %414 = vsyncpa [#allocation4], 1
    %415 = vsyncpa [#allocation6], 1
    %416 = vsyncpa [#allocation9], 1

</llo_original>
